<compile_context>
chip_gen: v5e
topology: v5e:2x2
jax: 0.10.0
libtpu: 0.0.40
codegen_flags: <defaults>
</compile_context>

<pallas_src>
import jax
import jax.numpy as jnp
from jax.experimental import pallas as pl
from jax.experimental.pallas import tpu as pltpu


_PACK = 8  # batch rows packed per VMEM row (= f32 sublane count)


def _round_up(n: int, m: int) -> int:
    return ((n + m - 1) // m) * m


def mlp_kernel(x_ref, w1_ref, b1_ref, w2_ref, b2_ref, o_ref):
    # x_ref: (tbr, PACK*F_in) -- PACK batch rows packed per row, lane-dense.
    x = x_ref[...]
    # Layer 1: w1_ref = kron(I_PACK, W1^T) -> per-packed-slot x @ W1^T.
    h = jnp.dot(x, w1_ref[...], preferred_element_type=jnp.float32)
    h = jnp.maximum(h + b1_ref[...], 0.0)            # bias + ReLU on the VPU
    # Layer 2: w2_ref = kron(I_PACK, W2^T).
    y = jnp.dot(h, w2_ref[...], preferred_element_type=jnp.float32)
    o_ref[...] = (y + b2_ref[...]).astype(o_ref.dtype)


def toy_model_forward(x, w1, b1, w2, b2, *, block_rows: int = 32768):
    """x: (B, 10); w1: (10, 10) PyTorch (out,in); b1: (10,); w2: (5, 10); b2: (5,).

    block_rows = batch rows processed per grid step (default 32768 batch rows
    == 4096 packed rows -> ~8 MiB double-buffered VMEM, well under the 32 MiB
    scoped default on v5e/v6e/v7x, and ~2 MB of useful HBM traffic per step so
    the per-step overhead is amortized).
    """
    B, F_in = x.shape
    F_hid = w1.shape[0]
    F_out = w2.shape[0]
    G = _PACK

    # Block-diagonal ("packed") parameters.  Tiny (<= 80x80 f32), built once per
    # call in the wrapper; exact zeros off the diagonal leave numerics unchanged.
    eye = jnp.eye(G, dtype=w1.dtype)
    w1p = jnp.kron(eye, w1.T)                 # (G*F_in,  G*F_hid) = (80, 80)
    w2p = jnp.kron(eye, w2.T)                 # (G*F_hid, G*F_out) = (80, 40)
    b1p = jnp.tile(b1, G).reshape(1, G * F_hid)
    b2p = jnp.tile(b2, G).reshape(1, G * F_out)
    GF_in, GF_hid, GF_out = G * F_in, G * F_hid, G * F_out

    # Packed-row tiling: tbr packed rows per grid step (multiple of 8 sublanes).
    rows = pl.cdiv(B, G)                               # packed rows needed
    tbr_req = max(8, _round_up(block_rows, G * 8) // G)
    tbr = min(tbr_req, _round_up(rows, 8))
    rows_pad = _round_up(rows, tbr)
    B_pad = rows_pad * G
    if B_pad != B:
        x = jnp.pad(x, ((0, B_pad - B), (0, 0)))
    # Contiguous (free) reshape: each packed row holds G consecutive batch rows.
    xp = x.reshape(rows_pad, GF_in)

    grid = (rows_pad // tbr,)

    param_bytes = (w1p.size + b1p.size + w2p.size + b2p.size) * 4
    cost = pl.CostEstimate(
        flops=2 * rows_pad * GF_in * GF_hid + 2 * rows_pad * GF_hid * GF_out,
        transcendentals=0,
        bytes_accessed=rows_pad * (GF_in + GF_out) * 4 + param_bytes,
    )

    out_packed = pl.pallas_call(
        mlp_kernel,
        out_shape=jax.ShapeDtypeStruct((rows_pad, GF_out), x.dtype),
        grid=grid,
        in_specs=[
            # Batch-tiled, lane-dense activation blocks (double-buffered).
            pl.BlockSpec((tbr, GF_in), lambda i: (i, 0)),
            # Parameters: constant index maps -> VMEM-resident, DMA'd once.
            pl.BlockSpec((GF_in, GF_hid), lambda i: (0, 0)),
            pl.BlockSpec((1, GF_hid), lambda i: (0, 0)),
            pl.BlockSpec((GF_hid, GF_out), lambda i: (0, 0)),
            pl.BlockSpec((1, GF_out), lambda i: (0, 0)),
        ],
        out_specs=pl.BlockSpec((tbr, GF_out), lambda i: (i, 0)),
        compiler_params=pltpu.CompilerParams(
            dimension_semantics=("parallel",),
        ),
        cost_estimate=cost,
    )(xp, w1p, b1p, w2p, b2p)

    out = out_packed.reshape(B_pad, F_out)             # free contiguous reshape
    return out[:B] if B_pad != B else out


def _reference(x, w1, b1, w2, b2):
    return jnp.maximum(x @ w1.T + b1, 0.0) @ w2.T + b2


if __name__ == "__main__":
    key = jax.random.PRNGKey(0)
    k_x, k_w1, k_b1, k_w2, k_b2, k_x2 = jax.random.split(key, 6)

    # PyTorch-style parameter shapes: weight = (out_features, in_features).
    w1 = jax.random.normal(k_w1, (10, 10), dtype=jnp.float32) * 0.1
    b1 = jax.random.normal(k_b1, (10,), dtype=jnp.float32) * 0.1
    w2 = jax.random.normal(k_w2, (5, 10), dtype=jnp.float32) * 0.1
    b2 = jax.random.normal(k_b2, (5,), dtype=jnp.float32) * 0.1

    # Small batch (single grid step, needs padding to a full packed tile).
    B = 8
    x = jax.random.normal(k_x, (B, 10), dtype=jnp.float32)
    out = toy_model_forward(x, w1, b1, w2, b2)
    jax.block_until_ready(out)
    ref = _reference(x, w1, b1, w2, b2)
    assert out.shape == (B, 5)
    assert jnp.allclose(out, ref, atol=1e-5, rtol=1e-5)

    # Larger, non-divisible batch with a small tile: exercises padding +
    # multi-step pipelined grid (300 rows -> 5 grid steps of 64 batch rows).
    B2 = 300
    x2 = jax.random.normal(k_x2, (B2, 10), dtype=jnp.float32)
    out2 = toy_model_forward(x2, w1, b1, w2, b2, block_rows=64)
    jax.block_until_ready(out2)
    ref2 = _reference(x2, w1, b1, w2, b2)
    assert out2.shape == (B2, 5)
    assert jnp.allclose(out2, ref2, atol=1e-5, rtol=1e-5)

    print("KERNEL_OK")
</pallas_src>

<mosaic_0001>
module attributes {stable_mosaic.version = 11 : i64} {
  func.func @mlp_kernel(%arg0: i32, %arg1: memref<8x80xf32, #tpu.memory_space<vmem>>, %arg2: memref<80x80xf32, #tpu.memory_space<vmem>>, %arg3: memref<1x80xf32, #tpu.memory_space<vmem>>, %arg4: memref<80x40xf32, #tpu.memory_space<vmem>>, %arg5: memref<1x40xf32, #tpu.memory_space<vmem>>, %arg6: memref<8x40xf32, #tpu.memory_space<vmem>>) attributes {dimension_semantics = [#tpu.dimension_semantics<parallel>], iteration_bounds = array<i64: 1>, scalar_prefetch = 0 : i64, scratch_operands = 0 : i64, tpu.core_type = #tpu.core_type<tc>, window_params = [{transform_indices = @transform_0, window_bounds = array<i64: 8, 80>}, {pipeline_mode = #tpu.pipeline_mode<synchronous>, transform_indices = @transform_1, window_bounds = array<i64: 80, 80>}, {pipeline_mode = #tpu.pipeline_mode<synchronous>, transform_indices = @transform_2, window_bounds = array<i64: 1, 80>}, {pipeline_mode = #tpu.pipeline_mode<synchronous>, transform_indices = @transform_3, window_bounds = array<i64: 80, 40>}, {pipeline_mode = #tpu.pipeline_mode<synchronous>, transform_indices = @transform_4, window_bounds = array<i64: 1, 40>}, {transform_indices = @transform_5, window_bounds = array<i64: 8, 40>}]} {
    %c0 = arith.constant 0 : index
    %c0_0 = arith.constant 0 : index
    %0 = vector.load %arg1[%c0, %c0_0] : memref<8x80xf32, #tpu.memory_space<vmem>>, vector<8x80xf32>
    %c0_1 = arith.constant 0 : index
    %c0_2 = arith.constant 0 : index
    %1 = vector.load %arg2[%c0_1, %c0_2] : memref<80x80xf32, #tpu.memory_space<vmem>>, vector<80x80xf32>
    %cst = arith.constant dense<0.000000e+00> : vector<8x80xf32>
    %2 = tpu.matmul %0, %1, %cst {dimension_numbers = #tpu.dot_dimension_numbers<[1], [0], [0], [1], [0, 0, 1, 1], [], []>} : vector<8x80xf32>, vector<80x80xf32>, vector<8x80xf32> -> vector<8x80xf32>
    %c0_3 = arith.constant 0 : index
    %c0_4 = arith.constant 0 : index
    %3 = vector.load %arg3[%c0_3, %c0_4] : memref<1x80xf32, #tpu.memory_space<vmem>>, vector<1x80xf32>
    %4 = vector.broadcast %3 : vector<1x80xf32> to vector<8x80xf32>
    %5 = arith.addf %2, %4 : vector<8x80xf32>
    %cst_5 = arith.constant 0.000000e+00 : f32
    %6 = vector.broadcast %cst_5 : f32 to vector<8x80xf32>
    %7 = arith.maximumf %5, %6 : vector<8x80xf32>
    %c0_6 = arith.constant 0 : index
    %c0_7 = arith.constant 0 : index
    %8 = vector.load %arg4[%c0_6, %c0_7] : memref<80x40xf32, #tpu.memory_space<vmem>>, vector<80x40xf32>
    %cst_8 = arith.constant dense<0.000000e+00> : vector<8x40xf32>
    %9 = tpu.matmul %7, %8, %cst_8 {dimension_numbers = #tpu.dot_dimension_numbers<[1], [0], [0], [1], [0, 0, 1, 1], [], []>} : vector<8x80xf32>, vector<80x40xf32>, vector<8x40xf32> -> vector<8x40xf32>
    %c0_9 = arith.constant 0 : index
    %c0_10 = arith.constant 0 : index
    %10 = vector.load %arg5[%c0_9, %c0_10] : memref<1x40xf32, #tpu.memory_space<vmem>>, vector<1x40xf32>
    %11 = vector.broadcast %10 : vector<1x40xf32> to vector<8x40xf32>
    %12 = arith.addf %9, %11 : vector<8x40xf32>
    %c0_11 = arith.constant 0 : index
    %c0_12 = arith.constant 0 : index
    %13 = vector.load %arg6[%c0_11, %c0_12] : memref<8x40xf32, #tpu.memory_space<vmem>>, vector<8x40xf32>
    tpu.vector_store %arg6[%c0_11, %c0_12], %12 {strides = array<i32>} : memref<8x40xf32, #tpu.memory_space<vmem>>, vector<8x40xf32>,
    return
  }
  func.func @transform_0(%arg0: i32) -> (i32, i32) {
    %c0_i32 = arith.constant 0 : i32
    %c0_i32_0 = arith.constant 0 : i32
    return %arg0, %c0_i32 : i32, i32
  }
  func.func @transform_1(%arg0: i32) -> (i32, i32) {
    %c0_i32 = arith.constant 0 : i32
    %c0_i32_0 = arith.constant 0 : i32
    %c0_i32_1 = arith.constant 0 : i32
    return %c0_i32, %c0_i32_0 : i32, i32
  }
  func.func @transform_2(%arg0: i32) -> (i32, i32) {
    %c0_i32 = arith.constant 0 : i32
    %c0_i32_0 = arith.constant 0 : i32
    %c0_i32_1 = arith.constant 0 : i32
    return %c0_i32, %c0_i32_0 : i32, i32
  }
  func.func @transform_3(%arg0: i32) -> (i32, i32) {
    %c0_i32 = arith.constant 0 : i32
    %c0_i32_0 = arith.constant 0 : i32
    %c0_i32_1 = arith.constant 0 : i32
    return %c0_i32, %c0_i32_0 : i32, i32
  }
  func.func @transform_4(%arg0: i32) -> (i32, i32) {
    %c0_i32 = arith.constant 0 : i32
    %c0_i32_0 = arith.constant 0 : i32
    %c0_i32_1 = arith.constant 0 : i32
    return %c0_i32, %c0_i32_0 : i32, i32
  }
  func.func @transform_5(%arg0: i32) -> (i32, i32) {
    %c0_i32 = arith.constant 0 : i32
    %c0_i32_0 = arith.constant 0 : i32
    return %arg0, %c0_i32 : i32, i32
  }
}

</mosaic_0001>

<llo_original>
// kernel: tpu_custom_call.1
$region0: #{tpu_custom_call.1}
  #allocation0 [shape = 'u32[]', space=smem, size = 0x4, offset = 0x4, fixed_abs, tag = 'smem constant byte address 0x4 - core index']
  #allocation1 [shape = 'u32[72,128]{1,0:T(1,128)}', space=vmem, size = 0x9000, scoped, tag = 'internal scratch']
  %s0 = inlined_call_operand.vmem [shape: f32[8,80], index: 0, kind: input, shape index: {}]
  %s1 = inlined_call_operand.vmem [shape: f32[80,80], index: 1, kind: input, shape index: {}]
  %s2 = inlined_call_operand.vmem [shape: f32[1,80], index: 2, kind: input, shape index: {}]
  %s3 = inlined_call_operand.vmem [shape: f32[80,40], index: 3, kind: input, shape index: {}]
  %s4 = inlined_call_operand.vmem [shape: f32[1,40], index: 4, kind: input, shape index: {}]
  %s5 = inlined_call_operand.hbm [shape: f32[8,40], index: 5, kind: output, shape index: {}]
  %s6 = sld [smem:[#allocation0]]
  $region30: #{tpu_custom_call.1} parent=0
    _
  %s8 = ssub.s32 1, %s6
  %s9 = scalar_select 0, %s8, %s6
  $region1: #{tpu_custom_call.1} parent=0
    #allocation2 [shape = 'u8[4096]{0}', space=vmem, size = 0x1000, scoped, tag = 'output window, operand 0, single buffered']
    #allocation3 [shape = 's32[1]{0}', space=sflag, size = 0x4, scoped, tag = 'scoped memory for tpu_custom_call.1']
    %10 = vsyncpa [#allocation3], 0
    // Predicated region
    $region2: #{tpu_custom_call.1} parent=1 // pred_check
      _
    $region3: #{tpu_custom_call.1} parent=1 // pred_check_branch
      %12 = sbr.rel (0) target = $region5
    $region4: #{tpu_custom_call.1} parent=1 // pred_region
      _
    $region5: #{tpu_custom_call.1} parent=1 // pred_fallthru
      _
    // Predicated region
    $region6: #{tpu_custom_call.1} parent=1 // pred_check
      _
    $region7: #{tpu_custom_call.1} parent=1 // pred_check_branch
      %14 = sbr.rel (0) target = $region9
    $region8: #{tpu_custom_call.1} parent=1 // pred_region
      _
    $region9: #{tpu_custom_call.1} parent=1 // pred_fallthru
      _
    // Predicated region
    $region10: #{tpu_custom_call.1} parent=1 // pred_check
      _
    $region11: #{tpu_custom_call.1} parent=1 // pred_check_branch
      %16 = sbr.rel (0) target = $region13
    $region12: #{tpu_custom_call.1} parent=1 // pred_region
      _
    $region13: #{tpu_custom_call.1} parent=1 // pred_fallthru
      _
    // Predicated region
    $region14: #{tpu_custom_call.1} parent=1 // pred_check
      _
    $region15: #{tpu_custom_call.1} parent=1 // pred_check_branch
      %18 = sbr.rel (0) target = $region17
    $region16: #{tpu_custom_call.1} parent=1 // pred_region
      _
    $region17: #{tpu_custom_call.1} parent=1 // pred_fallthru
      _
    // Predicated region
    $region18: #{tpu_custom_call.1} parent=1 // pred_check
      _
    $region19: #{tpu_custom_call.1} parent=1 // pred_check_branch
      %20 = sbr.rel (0) target = $region21
    $region20: #{tpu_custom_call.1} parent=1 // pred_region
      _
    $region21: #{tpu_custom_call.1} parent=1 // pred_fallthru
      _
    %v21 = vld [vmem:[%s0] sm:$0xff]
    %v22 = vld [vmem:[%s1] sm:$0xff]
    %v23 = vld [vmem:[%s1 + $0x8] sm:$0xff]
    %v24 = vld [vmem:[%s1 + $0x10] sm:$0xff]
    %v25 = vld [vmem:[%s1 + $0x18] sm:$0xff]
    %v26 = vld [vmem:[%s1 + $0x20] sm:$0xff]
    %v27 = vld [vmem:[%s1 + $0x28] sm:$0xff]
    %v28 = vld [vmem:[%s1 + $0x30] sm:$0xff]
    %v29 = vld [vmem:[%s1 + $0x38] sm:$0xff]
    %v30 = vld [vmem:[%s1 + $0x40] sm:$0xff]
    %v31 = vld [vmem:[%s1 + $0x48] sm:$0xff]
    %v32 = vld [vmem:[%s2] sm:$0x1]
    %v34 = vperm.slane %v32, 0
    %vm36 = vcmask 654336
    %v38 = vsel %vm36, %v21, 0
    %40 = vmatpush.msra.mxu0 0.0
    %41 = vmatpush.msra.mxu0 0.0
    %42 = vmatpush.msra.mxu0 0.0
    %43 = vmatpush.msra.mxu0 0.0
    %44 = vmatpush.msra.mxu0 0.0
    %45 = vmatpush.msra.mxu0 0.0
    %46 = vmatpush.msra.mxu0 %v31
    %47 = vmatpush.msra.mxu0 %v30
    %48 = vmatpush.msra.mxu0 %v29
    %49 = vmatpush.msra.mxu0 %v28
    %50 = vmatpush.msra.mxu0 %v27
    %51 = vmatpush.msra.mxu0 %v26
    %52 = vmatpush.msra.mxu0 %v25
    %53 = vmatpush.msra.mxu0 %v24
    %54 = vmatpush.msra.mxu0 %v23
    %55 = vmatpush.msra.mxu0 %v22
    %56 = vmatmul.f32.gmra.mxu0 %v38
    %v57 = vpop.f32.mrf.mxu0
    %v58 = vadd.f32 %v34, %v57
    %59 = vdwg.mxu0
    %v60 = vmax.f32 %v58, 0.0
    %v61 = vld [vmem:[%s3] sm:$0xff]
    %v62 = vld [vmem:[%s3 + $0x8] sm:$0xff]
    %v63 = vld [vmem:[%s3 + $0x10] sm:$0xff]
    %v64 = vld [vmem:[%s3 + $0x18] sm:$0xff]
    %v65 = vld [vmem:[%s3 + $0x20] sm:$0xff]
    %v66 = vld [vmem:[%s3 + $0x28] sm:$0xff]
    %v67 = vld [vmem:[%s3 + $0x30] sm:$0xff]
    %v68 = vld [vmem:[%s3 + $0x38] sm:$0xff]
    %v69 = vld [vmem:[%s3 + $0x40] sm:$0xff]
    %v70 = vld [vmem:[%s3 + $0x48] sm:$0xff]
    %v71 = vld [vmem:[%s4] sm:$0x1]
    %v73 = vperm.slane %v71, 0
    %v76 = vsel %vm36, %v60, 0
    %78 = vmatpush.msra.mxu0 0.0
    %79 = vmatpush.msra.mxu0 0.0
    %80 = vmatpush.msra.mxu0 0.0
    %81 = vmatpush.msra.mxu0 0.0
    %82 = vmatpush.msra.mxu0 0.0
    %83 = vmatpush.msra.mxu0 0.0
    %84 = vmatpush.msra.mxu0 %v70
    %85 = vmatpush.msra.mxu0 %v69
    %86 = vmatpush.msra.mxu0 %v68
    %87 = vmatpush.msra.mxu0 %v67
    %88 = vmatpush.msra.mxu0 %v66
    %89 = vmatpush.msra.mxu0 %v65
    %90 = vmatpush.msra.mxu0 %v64
    %91 = vmatpush.msra.mxu0 %v63
    %92 = vmatpush.msra.mxu0 %v62
    %93 = vmatpush.msra.mxu0 %v61
    %94 = vmatmul.f32.gmra.mxu0 %v76
    %v95 = vpop.f32.mrf.mxu0
    %v96 = vadd.f32 %v73, %v95
    %97 = vdwg.mxu0
    %vm98 = vcmask 326656
    %99 = vst.msk [vmem:[#allocation2] sm:$0xff] %vm98, %v96
    // Predicated region
    $region22: #{tpu_custom_call.1} parent=1 // pred_check
      _
    $region23: #{tpu_custom_call.1} parent=1 // pred_check_branch
      %101 = sbr.rel (0) target = $region25
    $region24: #{tpu_custom_call.1} parent=1 // pred_region
      %103 = vsyncadd [#allocation3], 0
      %s105 = sshll.u32 [#allocation2], 4
      %s106 = int_to_ptr.vmem [resolvable:$true] %s105
      %s107 = sshll.u32 %s5, 4
      %s108 = int_to_ptr.hbm [resolvable:$true] %s107
      %110 = dma.vmem_to_hbm [thread:$0]  %s106, 128, %s108, [#allocation3]
    $region25: #{tpu_custom_call.1} parent=1 // pred_fallthru
      _
    // Predicated region
    $region26: #{tpu_custom_call.1} parent=1 // pred_check
      _
    $region27: #{tpu_custom_call.1} parent=1 // pred_check_branch
      %112 = sbr.rel (0) target = $region29
    $region28: #{tpu_custom_call.1} parent=1 // pred_region
      %114 = dma.done [#allocation3], 128
    $region29: #{tpu_custom_call.1} parent=1 // pred_fallthru
      _
    %115 = vsyncpa [#allocation3], 1

</llo_original>
